<compile_context>
chip_gen: v6e
topology: v6e:2x2x1
jax: 0.10.0
libtpu: 0.0.40
codegen_flags: <defaults>
</compile_context>

<pallas_src>
import math

import numpy as np
import jax
import jax.numpy as jnp
from jax.experimental import pallas as pl
from jax.experimental.pallas import tpu as pltpu


# ----------------- PyTorch align_corners=False interp tables ---------------- #
def _source_index_and_lambda(in_len, scale):
    """Per output index: (floor src, ceil src clamped, frac) along one axis."""
    out_len = int(math.floor(in_len * scale))
    i0 = np.zeros((out_len,), np.int32)
    i1 = np.zeros((out_len,), np.int32)
    lam = np.zeros((out_len,), np.float32)
    for j in range(out_len):
        src = (j + 0.5) / scale - 0.5
        src = max(src, 0.0)
        a = min(int(math.floor(src)), in_len - 1)
        b = min(a + 1, in_len - 1)
        i0[j], i1[j], lam[j] = a, b, src - a
    return i0, i1, lam


def _interp_matrix(in_len, scale):
    """(out_len, in_len) dense linear-interp matrix (same convention)."""
    i0, i1, lam = _source_index_and_lambda(in_len, scale)
    out_len = i0.shape[0]
    M = np.zeros((out_len, in_len), np.float32)
    for j in range(out_len):
        M[j, i0[j]] += 1.0 - lam[j]
        M[j, i1[j]] += lam[j]
    return jnp.asarray(M)


# ------------------------------ fused kernel -------------------------------- #
def _dsv_fused_kernel(d0_ref, d1_ref,              # scalar-prefetch (used in index_maps)
                      x0_ref, x1_ref,              # (Cin, H, W) source depth planes
                      dfrac_ref, cw_ref, cb_ref,   # SMEM: depth lerp frac, conv w, conv b
                      mh_ref, mwt_ref,             # VMEM: (H_out, H), (W, W_out)
                      out_ref):                    # (Cout, H_out, W_out)
    del d0_ref, d1_ref
    di = pl.program_id(1)

    # Depth-axis lerp on the VPU: each output plane uses exactly 2 input planes.
    lam = dfrac_ref[di]
    x0 = x0_ref[...].astype(jnp.float32)
    x1 = x1_ref[...].astype(jnp.float32)
    xd = (1.0 - lam) * x0 + lam * x1               # (Cin, H, W), f32 accumulate

    mh = mh_ref[...]                               # (H_out, H)
    mwt = mwt_ref[...]                             # (W, W_out)

    cout = out_ref.shape[0]
    cin = xd.shape[0]
    for co in range(cout):
        # 1x1x1 conv as a VPU weighted sum over input channels (MXU skipped:
        # K=Cin, N=Cout are tiny).  Scalar weights/bias come from SMEM.
        y = cw_ref[co, 0] * xd[0]
        for ci in range(1, cin):
            y = y + cw_ref[co, ci] * xd[ci]
        y = y + cb_ref[co]                         # (H, W)

        # Separable H/W trilinear factor: M_h @ y @ M_w^T, all in VMEM.
        t = jnp.dot(mh, y, preferred_element_type=jnp.float32)    # (H_out, W)
        o = jnp.dot(t, mwt, preferred_element_type=jnp.float32)   # (H_out, W_out)
        out_ref[co, :, :] = o.astype(out_ref.dtype)


# ------------------------------ forward pass -------------------------------- #
def unet_dsv3_forward(x, conv_w, conv_b, scale_factor):
    """x: (N, Cin, D, H, W) f32; conv_w: (Cout, Cin, 1, 1, 1); conv_b: (Cout,)."""
    n, cin, d, h, w = x.shape
    cout = conv_w.shape[0]
    d_out = int(math.floor(d * scale_factor))
    h_out = int(math.floor(h * scale_factor))
    w_out = int(math.floor(w * scale_factor))

    d0, d1, dfrac = _source_index_and_lambda(d, scale_factor)
    mh = _interp_matrix(h, scale_factor)             # (h_out, h)
    mwt = _interp_matrix(w, scale_factor).T          # (w, w_out)

    wmat = conv_w.reshape(cout, cin).astype(jnp.float32)
    bias = conv_b.astype(jnp.float32)

    grid_spec = pltpu.PrefetchScalarGridSpec(
        num_scalar_prefetch=2,                       # d0 / d1 source-plane indices
        grid=(n, d_out),
        in_specs=[
            # Two views of the same input: floor / ceil source depth planes,
            # gathered straight from NCDHW HBM by the index_map (no transposes).
            pl.BlockSpec((None, cin, None, h, w),
                         lambda ni, di, d0r, d1r: (ni, 0, d0r[di], 0, 0)),
            pl.BlockSpec((None, cin, None, h, w),
                         lambda ni, di, d0r, d1r: (ni, 0, d1r[di], 0, 0)),
            pl.BlockSpec(memory_space=pltpu.MemorySpace.SMEM),   # depth lerp fracs
            pl.BlockSpec(memory_space=pltpu.MemorySpace.SMEM),   # conv weights (Cout, Cin)
            pl.BlockSpec(memory_space=pltpu.MemorySpace.SMEM),   # conv bias (Cout,)
            pl.BlockSpec((h_out, h), lambda ni, di, d0r, d1r: (0, 0)),
            pl.BlockSpec((w, w_out), lambda ni, di, d0r, d1r: (0, 0)),
        ],
        out_specs=pl.BlockSpec((None, cout, None, h_out, w_out),
                               lambda ni, di, d0r, d1r: (ni, 0, di, 0, 0)),
    )
    return pl.pallas_call(
        _dsv_fused_kernel,
        out_shape=jax.ShapeDtypeStruct((n, cout, d_out, h_out, w_out), x.dtype),
        grid_spec=grid_spec,
        compiler_params=pltpu.CompilerParams(
            dimension_semantics=("parallel", "parallel"),
            vmem_limit_bytes=32 * 1024 * 1024),      # explicit budget (v7x: 64 MiB VMEM)
    )(jnp.asarray(d0), jnp.asarray(d1),
      x, x, jnp.asarray(dfrac), wmat, bias, mh, mwt)


# ----------------------------- pure-JAX reference --------------------------- #
def _reference(x, conv_w, conv_b, scale_factor):
    n, cin, d, h, w = x.shape
    cout = conv_w.shape[0]
    y = jnp.einsum('oc,ncdhw->nodhw', conv_w.reshape(cout, cin), x)
    y = y + conv_b[None, :, None, None, None]
    md = _interp_matrix(d, scale_factor)
    mh = _interp_matrix(h, scale_factor)
    mw = _interp_matrix(w, scale_factor)
    y = jnp.einsum('pd,nodhw->nophw', md, y)
    y = jnp.einsum('qh,nophw->nopqw', mh, y)
    y = jnp.einsum('rw,nopqw->nopqr', mw, y)
    return y


# --------------------------------- main -------------------------------------- #
if __name__ == "__main__":
    key = jax.random.PRNGKey(0)
    k_x, k_w, k_b = jax.random.split(key, 3)

    # Small shapes consistent with the module.
    batch, in_size, out_size = 2, 4, 2
    D = H = W = 8
    scale_factor = 2

    x = jax.random.normal(k_x, (batch, in_size, D, H, W), dtype=jnp.float32)

    fan_in = in_size  # 1x1x1 kernel
    bound = 1.0 / math.sqrt(fan_in)
    conv_w = jax.random.uniform(k_w, (out_size, in_size, 1, 1, 1),
                                minval=-bound, maxval=bound, dtype=jnp.float32)
    conv_b = jax.random.uniform(k_b, (out_size,),
                                minval=-bound, maxval=bound, dtype=jnp.float32)

    out = unet_dsv3_forward(x, conv_w, conv_b, scale_factor)
    out = jax.block_until_ready(out)

    expected_shape = (batch, out_size, D * scale_factor, H * scale_factor,
                      W * scale_factor)
    assert out.shape == expected_shape, (out.shape, expected_shape)
    assert out.dtype == jnp.float32

    ref = jax.block_until_ready(_reference(x, conv_w, conv_b, scale_factor))
    assert np.allclose(np.asarray(out), np.asarray(ref), atol=1e-4, rtol=1e-4)

    print("KERNEL_OK")
</pallas_src>

<mosaic_0001>
module attributes {stable_mosaic.version = 11 : i64} {
  func.func @_dsv_fused_kernel(%arg0: i32, %arg1: i32, %arg2: memref<16xi32, #tpu.memory_space<smem>>, %arg3: memref<16xi32, #tpu.memory_space<smem>>, %arg4: memref<1x4x1x8x8xf32, #tpu.memory_space<vmem>>, %arg5: memref<1x4x1x8x8xf32, #tpu.memory_space<vmem>>, %arg6: memref<16xf32, #tpu.memory_space<smem>>, %arg7: memref<2x4xf32, #tpu.memory_space<smem>>, %arg8: memref<2xf32, #tpu.memory_space<smem>>, %arg9: memref<16x8xf32, #tpu.memory_space<vmem>>, %arg10: memref<8x16xf32, #tpu.memory_space<vmem>>, %arg11: memref<1x2x1x16x16xf32, #tpu.memory_space<vmem>>) attributes {dimension_semantics = [#tpu.dimension_semantics<parallel>, #tpu.dimension_semantics<parallel>], iteration_bounds = array<i64: 2, 16>, scalar_prefetch = 2 : i64, scratch_operands = 0 : i64, tpu.core_type = #tpu.core_type<tc>, window_params = [{transform_indices = @transform_0, window_bounds = array<i64: 1, 4, 1, 8, 8>}, {transform_indices = @transform_1, window_bounds = array<i64: 1, 4, 1, 8, 8>}, {transform_indices = @transform_2, window_bounds = array<i64: 16>}, {transform_indices = @transform_3, window_bounds = array<i64: 2, 4>}, {transform_indices = @transform_4, window_bounds = array<i64: 2>}, {pipeline_mode = #tpu.pipeline_mode<synchronous>, transform_indices = @transform_5, window_bounds = array<i64: 16, 8>}, {pipeline_mode = #tpu.pipeline_mode<synchronous>, transform_indices = @transform_6, window_bounds = array<i64: 8, 16>}, {transform_indices = @transform_7, window_bounds = array<i64: 1, 2, 1, 16, 16>}]} {
    %0 = arith.index_cast %arg1 : i32 to index
    %1 = memref.load %arg6[%0] : memref<16xf32, #tpu.memory_space<smem>>
    %c0 = arith.constant 0 : index
    %c0_0 = arith.constant 0 : index
    %c0_1 = arith.constant 0 : index
    %c0_2 = arith.constant 0 : index
    %c0_3 = arith.constant 0 : index
    %2 = vector.load %arg4[%c0, %c0_0, %c0_1, %c0_2, %c0_3] : memref<1x4x1x8x8xf32, #tpu.memory_space<vmem>>, vector<1x4x1x8x8xf32>
    %3 = vector.shape_cast %2 : vector<1x4x1x8x8xf32> to vector<4x8x8xf32>
    %c0_4 = arith.constant 0 : index
    %c0_5 = arith.constant 0 : index
    %c0_6 = arith.constant 0 : index
    %c0_7 = arith.constant 0 : index
    %c0_8 = arith.constant 0 : index
    %4 = vector.load %arg5[%c0_4, %c0_5, %c0_6, %c0_7, %c0_8] : memref<1x4x1x8x8xf32, #tpu.memory_space<vmem>>, vector<1x4x1x8x8xf32>
    %5 = vector.shape_cast %4 : vector<1x4x1x8x8xf32> to vector<4x8x8xf32>
    %cst = arith.constant 1.000000e+00 : f32
    %6 = arith.subf %cst, %1 : f32
    %7 = vector.broadcast %6 : f32 to vector<4x8x8xf32>
    %8 = arith.mulf %7, %3 : vector<4x8x8xf32>
    %9 = vector.broadcast %1 : f32 to vector<4x8x8xf32>
    %10 = arith.mulf %9, %5 : vector<4x8x8xf32>
    %11 = arith.addf %8, %10 : vector<4x8x8xf32>
    %c0_9 = arith.constant 0 : index
    %c0_10 = arith.constant 0 : index
    %12 = vector.load %arg9[%c0_9, %c0_10] : memref<16x8xf32, #tpu.memory_space<vmem>>, vector<16x8xf32>
    %c0_11 = arith.constant 0 : index
    %c0_12 = arith.constant 0 : index
    %13 = vector.load %arg10[%c0_11, %c0_12] : memref<8x16xf32, #tpu.memory_space<vmem>>, vector<8x16xf32>
    %c0_13 = arith.constant 0 : index
    %c0_14 = arith.constant 0 : index
    %14 = memref.load %arg7[%c0_13, %c0_14] : memref<2x4xf32, #tpu.memory_space<smem>>
    %15 = vector.extract_strided_slice %11 {offsets = [0, 0, 0], sizes = [1, 8, 8], strides = [1, 1, 1]} : vector<4x8x8xf32> to vector<1x8x8xf32>
    %16 = vector.shape_cast %15 : vector<1x8x8xf32> to vector<8x8xf32>
    %17 = vector.broadcast %14 : f32 to vector<8x8xf32>
    %18 = arith.mulf %17, %16 : vector<8x8xf32>
    %c0_15 = arith.constant 0 : index
    %c1 = arith.constant 1 : index
    %19 = memref.load %arg7[%c0_15, %c1] : memref<2x4xf32, #tpu.memory_space<smem>>
    %20 = vector.extract_strided_slice %11 {offsets = [1, 0, 0], sizes = [1, 8, 8], strides = [1, 1, 1]} : vector<4x8x8xf32> to vector<1x8x8xf32>
    %21 = vector.shape_cast %20 : vector<1x8x8xf32> to vector<8x8xf32>
    %22 = vector.broadcast %19 : f32 to vector<8x8xf32>
    %23 = arith.mulf %22, %21 : vector<8x8xf32>
    %24 = arith.addf %18, %23 : vector<8x8xf32>
    %c0_16 = arith.constant 0 : index
    %c2 = arith.constant 2 : index
    %25 = memref.load %arg7[%c0_16, %c2] : memref<2x4xf32, #tpu.memory_space<smem>>
    %26 = vector.extract_strided_slice %11 {offsets = [2, 0, 0], sizes = [1, 8, 8], strides = [1, 1, 1]} : vector<4x8x8xf32> to vector<1x8x8xf32>
    %27 = vector.shape_cast %26 : vector<1x8x8xf32> to vector<8x8xf32>
    %28 = vector.broadcast %25 : f32 to vector<8x8xf32>
    %29 = arith.mulf %28, %27 : vector<8x8xf32>
    %30 = arith.addf %24, %29 : vector<8x8xf32>
    %c0_17 = arith.constant 0 : index
    %c3 = arith.constant 3 : index
    %31 = memref.load %arg7[%c0_17, %c3] : memref<2x4xf32, #tpu.memory_space<smem>>
    %32 = vector.extract_strided_slice %11 {offsets = [3, 0, 0], sizes = [1, 8, 8], strides = [1, 1, 1]} : vector<4x8x8xf32> to vector<1x8x8xf32>
    %33 = vector.shape_cast %32 : vector<1x8x8xf32> to vector<8x8xf32>
    %34 = vector.broadcast %31 : f32 to vector<8x8xf32>
    %35 = arith.mulf %34, %33 : vector<8x8xf32>
    %36 = arith.addf %30, %35 : vector<8x8xf32>
    %c0_18 = arith.constant 0 : index
    %37 = memref.load %arg8[%c0_18] : memref<2xf32, #tpu.memory_space<smem>>
    %38 = vector.broadcast %37 : f32 to vector<8x8xf32>
    %39 = arith.addf %36, %38 : vector<8x8xf32>
    %cst_19 = arith.constant dense<0.000000e+00> : vector<16x8xf32>
    %40 = tpu.matmul %12, %39, %cst_19 {dimension_numbers = #tpu.dot_dimension_numbers<[1], [0], [0], [1], [0, 0, 1, 1], [], []>} : vector<16x8xf32>, vector<8x8xf32>, vector<16x8xf32> -> vector<16x8xf32>
    %cst_20 = arith.constant dense<0.000000e+00> : vector<16x16xf32>
    %41 = tpu.matmul %40, %13, %cst_20 {dimension_numbers = #tpu.dot_dimension_numbers<[1], [0], [0], [1], [0, 0, 1, 1], [], []>} : vector<16x8xf32>, vector<8x16xf32>, vector<16x16xf32> -> vector<16x16xf32>
    %c0_21 = arith.constant 0 : index
    %c0_22 = arith.constant 0 : index
    %c0_23 = arith.constant 0 : index
    %c0_24 = arith.constant 0 : index
    %c0_25 = arith.constant 0 : index
    %42 = vector.load %arg11[%c0_21, %c0_22, %c0_23, %c0_24, %c0_25] : memref<1x2x1x16x16xf32, #tpu.memory_space<vmem>>, vector<1x1x1x16x16xf32>
    %43 = vector.shape_cast %42 : vector<1x1x1x16x16xf32> to vector<16x16xf32>
    %44 = vector.shape_cast %41 : vector<16x16xf32> to vector<1x1x1x16x16xf32>
    tpu.vector_store %arg11[%c0_21, %c0_22, %c0_23, %c0_24, %c0_25], %44 {strides = array<i32>} : memref<1x2x1x16x16xf32, #tpu.memory_space<vmem>>, vector<1x1x1x16x16xf32>,
    %c1_26 = arith.constant 1 : index
    %c0_27 = arith.constant 0 : index
    %45 = memref.load %arg7[%c1_26, %c0_27] : memref<2x4xf32, #tpu.memory_space<smem>>
    %46 = vector.extract_strided_slice %11 {offsets = [0, 0, 0], sizes = [1, 8, 8], strides = [1, 1, 1]} : vector<4x8x8xf32> to vector<1x8x8xf32>
    %47 = vector.shape_cast %46 : vector<1x8x8xf32> to vector<8x8xf32>
    %48 = vector.broadcast %45 : f32 to vector<8x8xf32>
    %49 = arith.mulf %48, %47 : vector<8x8xf32>
    %c1_28 = arith.constant 1 : index
    %c1_29 = arith.constant 1 : index
    %50 = memref.load %arg7[%c1_28, %c1_29] : memref<2x4xf32, #tpu.memory_space<smem>>
    %51 = vector.extract_strided_slice %11 {offsets = [1, 0, 0], sizes = [1, 8, 8], strides = [1, 1, 1]} : vector<4x8x8xf32> to vector<1x8x8xf32>
    %52 = vector.shape_cast %51 : vector<1x8x8xf32> to vector<8x8xf32>
    %53 = vector.broadcast %50 : f32 to vector<8x8xf32>
    %54 = arith.mulf %53, %52 : vector<8x8xf32>
    %55 = arith.addf %49, %54 : vector<8x8xf32>
    %c1_30 = arith.constant 1 : index
    %c2_31 = arith.constant 2 : index
    %56 = memref.load %arg7[%c1_30, %c2_31] : memref<2x4xf32, #tpu.memory_space<smem>>
    %57 = vector.extract_strided_slice %11 {offsets = [2, 0, 0], sizes = [1, 8, 8], strides = [1, 1, 1]} : vector<4x8x8xf32> to vector<1x8x8xf32>
    %58 = vector.shape_cast %57 : vector<1x8x8xf32> to vector<8x8xf32>
    %59 = vector.broadcast %56 : f32 to vector<8x8xf32>
    %60 = arith.mulf %59, %58 : vector<8x8xf32>
    %61 = arith.addf %55, %60 : vector<8x8xf32>
    %c1_32 = arith.constant 1 : index
    %c3_33 = arith.constant 3 : index
    %62 = memref.load %arg7[%c1_32, %c3_33] : memref<2x4xf32, #tpu.memory_space<smem>>
    %63 = vector.extract_strided_slice %11 {offsets = [3, 0, 0], sizes = [1, 8, 8], strides = [1, 1, 1]} : vector<4x8x8xf32> to vector<1x8x8xf32>
    %64 = vector.shape_cast %63 : vector<1x8x8xf32> to vector<8x8xf32>
    %65 = vector.broadcast %62 : f32 to vector<8x8xf32>
    %66 = arith.mulf %65, %64 : vector<8x8xf32>
    %67 = arith.addf %61, %66 : vector<8x8xf32>
    %c1_34 = arith.constant 1 : index
    %68 = memref.load %arg8[%c1_34] : memref<2xf32, #tpu.memory_space<smem>>
    %69 = vector.broadcast %68 : f32 to vector<8x8xf32>
    %70 = arith.addf %67, %69 : vector<8x8xf32>
    %cst_35 = arith.constant dense<0.000000e+00> : vector<16x8xf32>
    %71 = tpu.matmul %12, %70, %cst_35 {dimension_numbers = #tpu.dot_dimension_numbers<[1], [0], [0], [1], [0, 0, 1, 1], [], []>} : vector<16x8xf32>, vector<8x8xf32>, vector<16x8xf32> -> vector<16x8xf32>
    %cst_36 = arith.constant dense<0.000000e+00> : vector<16x16xf32>
    %72 = tpu.matmul %71, %13, %cst_36 {dimension_numbers = #tpu.dot_dimension_numbers<[1], [0], [0], [1], [0, 0, 1, 1], [], []>} : vector<16x8xf32>, vector<8x16xf32>, vector<16x16xf32> -> vector<16x16xf32>
    %c0_37 = arith.constant 0 : index
    %c1_38 = arith.constant 1 : index
    %c0_39 = arith.constant 0 : index
    %c0_40 = arith.constant 0 : index
    %c0_41 = arith.constant 0 : index
    %73 = vector.load %arg11[%c0_37, %c1_38, %c0_39, %c0_40, %c0_41] : memref<1x2x1x16x16xf32, #tpu.memory_space<vmem>>, vector<1x1x1x16x16xf32>
    %74 = vector.shape_cast %73 : vector<1x1x1x16x16xf32> to vector<16x16xf32>
    %75 = vector.shape_cast %72 : vector<16x16xf32> to vector<1x1x1x16x16xf32>
    tpu.vector_store %arg11[%c0_37, %c1_38, %c0_39, %c0_40, %c0_41], %75 {strides = array<i32>} : memref<1x2x1x16x16xf32, #tpu.memory_space<vmem>>, vector<1x1x1x16x16xf32>,
    return
  }
  func.func @transform_0(%arg0: i32, %arg1: i32, %arg2: memref<16xi32, #tpu.memory_space<smem>>, %arg3: memref<16xi32, #tpu.memory_space<smem>>) -> (i32, i32, i32, i32, i32) {
    %0 = arith.index_cast %arg1 : i32 to index
    %1 = memref.load %arg2[%0] : memref<16xi32, #tpu.memory_space<smem>>
    %c0_i32 = arith.constant 0 : i32
    %c0_i32_0 = arith.constant 0 : i32
    %c0_i32_1 = arith.constant 0 : i32
    %c0_i32_2 = arith.constant 0 : i32
    return %arg0, %c0_i32, %1, %c0_i32_0, %c0_i32_1 : i32, i32, i32, i32, i32
  }
  func.func @transform_1(%arg0: i32, %arg1: i32, %arg2: memref<16xi32, #tpu.memory_space<smem>>, %arg3: memref<16xi32, #tpu.memory_space<smem>>) -> (i32, i32, i32, i32, i32) {
    %0 = arith.index_cast %arg1 : i32 to index
    %1 = memref.load %arg3[%0] : memref<16xi32, #tpu.memory_space<smem>>
    %c0_i32 = arith.constant 0 : i32
    %c0_i32_0 = arith.constant 0 : i32
    %c0_i32_1 = arith.constant 0 : i32
    %c0_i32_2 = arith.constant 0 : i32
    return %arg0, %c0_i32, %1, %c0_i32_0, %c0_i32_1 : i32, i32, i32, i32, i32
  }
  func.func @transform_2(%arg0: i32, %arg1: i32, %arg2: memref<16xi32, #tpu.memory_space<smem>>, %arg3: memref<16xi32, #tpu.memory_space<smem>>) -> i32 {
    %c0_i32 = arith.constant 0 : i32
    %c0_i32_0 = arith.constant 0 : i32
    return %c0_i32 : i32
  }
  func.func @transform_3(%arg0: i32, %arg1: i32, %arg2: memref<16xi32, #tpu.memory_space<smem>>, %arg3: memref<16xi32, #tpu.memory_space<smem>>) -> (i32, i32) {
    %c0_i32 = arith.constant 0 : i32
    %c0_i32_0 = arith.constant 0 : i32
    %c0_i32_1 = arith.constant 0 : i32
    return %c0_i32, %c0_i32_0 : i32, i32
  }
  func.func @transform_4(%arg0: i32, %arg1: i32, %arg2: memref<16xi32, #tpu.memory_space<smem>>, %arg3: memref<16xi32, #tpu.memory_space<smem>>) -> i32 {
    %c0_i32 = arith.constant 0 : i32
    %c0_i32_0 = arith.constant 0 : i32
    return %c0_i32 : i32
  }
  func.func @transform_5(%arg0: i32, %arg1: i32, %arg2: memref<16xi32, #tpu.memory_space<smem>>, %arg3: memref<16xi32, #tpu.memory_space<smem>>) -> (i32, i32) {
    %c0_i32 = arith.constant 0 : i32
    %c0_i32_0 = arith.constant 0 : i32
    %c0_i32_1 = arith.constant 0 : i32
    return %c0_i32, %c0_i32_0 : i32, i32
  }
  func.func @transform_6(%arg0: i32, %arg1: i32, %arg2: memref<16xi32, #tpu.memory_space<smem>>, %arg3: memref<16xi32, #tpu.memory_space<smem>>) -> (i32, i32) {
    %c0_i32 = arith.constant 0 : i32
    %c0_i32_0 = arith.constant 0 : i32
    %c0_i32_1 = arith.constant 0 : i32
    return %c0_i32, %c0_i32_0 : i32, i32
  }
  func.func @transform_7(%arg0: i32, %arg1: i32, %arg2: memref<16xi32, #tpu.memory_space<smem>>, %arg3: memref<16xi32, #tpu.memory_space<smem>>) -> (i32, i32, i32, i32, i32) {
    %c0_i32 = arith.constant 0 : i32
    %c0_i32_0 = arith.constant 0 : i32
    %c0_i32_1 = arith.constant 0 : i32
    %c0_i32_2 = arith.constant 0 : i32
    return %arg0, %c0_i32, %arg1, %c0_i32_0, %c0_i32_1 : i32, i32, i32, i32, i32
  }
}

</mosaic_0001>

<llo_original>
// kernel: tpu_custom_call.1
$region0: #{tpu_custom_call.1}
  #allocation0 [shape = 'u32[]', space=smem, size = 0x4, offset = 0x4, fixed_abs, tag = 'smem constant byte address 0x4 - core index']
  #allocation1 [shape = 'u32[144,128]{1,0:T(1,128)}', space=vmem, size = 0x12000, scoped, tag = 'internal scratch']
  #allocation2 [shape = 's32[1]{0}', space=sflag, size = 0x4, scoped, tag = 'scoped memory for tpu_custom_call.1']
  #allocation3 [shape = 'u8[512]{0}', space=smem, size = 0x200, scoped, tag = 'prefetched SMEM operand 0']
  #allocation4 [shape = 'u8[512]{0}', space=smem, size = 0x200, scoped, tag = 'prefetched SMEM operand 1']
  #allocation16 [shape = 's32[]', space=sflag, size = 0x4, offset = 0, fixed_abs, tag = 'sflag constant byte address 0x0 - dummy sync flag']
  %s0 = inlined_call_operand.vmem [shape: s32[16], index: 0, kind: input, shape index: {}]
  %s1 = inlined_call_operand.vmem [shape: s32[16], index: 1, kind: input, shape index: {}]
  %s2 = inlined_call_operand.hbm [shape: f32[2,4,8,8,8], index: 2, kind: input, shape index: {}]
  %s3 = inlined_call_operand.hbm [shape: f32[2,4,8,8,8], index: 3, kind: input, shape index: {}]
  %s4 = inlined_call_operand.vmem [shape: f32[16], index: 4, kind: input, shape index: {}]
  %s5 = inlined_call_operand.vmem [shape: f32[2,4], index: 5, kind: input, shape index: {}]
  %s6 = inlined_call_operand.vmem [shape: f32[2], index: 6, kind: input, shape index: {}]
  %s7 = inlined_call_operand.vmem [shape: f32[16,8], index: 7, kind: input, shape index: {}]
  %s8 = inlined_call_operand.vmem [shape: f32[8,16], index: 8, kind: input, shape index: {}]
  %s9 = inlined_call_operand.hbm [shape: f32[2,2,16,16,16], index: 9, kind: output, shape index: {}]
  %s10 = sld [smem:[#allocation0]]
  $region81: #{tpu_custom_call.1} parent=0
    _
  %s12 = ssub.s32 1, %s10
  %s13 = scalar_select 0, %s12, %s10
  %s14 = sshll.u32 %s0, 4
  %s15 = int_to_ptr.vmem [resolvable:$true] %s14
  %17 = dma.vmem_to_smem %s15, 16, [#allocation3], [#allocation2]
  %s18 = sshll.u32 %s1, 4
  %s19 = int_to_ptr.vmem [resolvable:$true] %s18
  %21 = dma.vmem_to_smem %s19, 16, [#allocation4], [#allocation2]
  %22 = dma.done [#allocation2], 32
  %23 = sfence
  $region1: #{tpu_custom_call.1} parent=0
    #allocation5 [shape = 'u8[32768]{0}', space=vmem, size = 0x8000, scoped, tag = 'input window, operand 2']
    #allocation6 [shape = 's32[2]{0}', space=sflag, size = 0x8, scoped, tag = 'scoped memory for tpu_custom_call.1']
    #allocation7 [shape = 's32[2]{0}', space=sflag, size = 0x8, scoped, tag = 'scoped memory for tpu_custom_call.1']
    #allocation8 [shape = 's32[2]{0}', space=sflag, size = 0x8, scoped, tag = 'scoped memory for tpu_custom_call.1']
    #allocation9 [shape = 'u8[32768]{0}', space=vmem, size = 0x8000, scoped, tag = 'input window, operand 3']
    #allocation10 [shape = 's32[2]{0}', space=sflag, size = 0x8, scoped, tag = 'scoped memory for tpu_custom_call.1']
    #allocation11 [shape = 'u8[512]{0}', space=smem, size = 0x200, scoped, tag = 'input window, operand 4, single buffered']
    #allocation12 [shape = 'u8[1024]{0}', space=smem, size = 0x400, scoped, tag = 'input window, operand 5, single buffered']
    #allocation13 [shape = 's32[1]{0}', space=sflag, size = 0x4, scoped, tag = 'scoped memory for tpu_custom_call.1']
    #allocation14 [shape = 'u8[512]{0}', space=smem, size = 0x200, scoped, tag = 'input window, operand 6, single buffered']
    #allocation15 [shape = 'u8[32768]{0}', space=vmem, size = 0x8000, scoped, tag = 'output window, operand 0']
    %24 = vsyncpa [#allocation6], 0
    %s25 = scalar_lea.sflag [#allocation6], 1
    %26 = vsyncpa %s25, 0
    %27 = vsyncpa [#allocation10], 0
    %s28 = scalar_lea.sflag [#allocation10], 1
    %29 = vsyncpa %s28, 0
    %30 = vsyncpa [#allocation8], 0
    %31 = vsyncpa [#allocation13], 0
    %32 = vsyncpa [#allocation7], 0
    %s33 = scalar_lea.sflag [#allocation7], 1
    %34 = vsyncpa %s33, 0
    loop: start=0, step=1, limit=34
    $region2: #{tpu_custom_call.1} parent=1 // loop_pre_header
      _
    $region3: #{tpu_custom_call.1} parent=1 // loop_header
      %s36 = sphi 0, %s40
      %p37 = scmp.ge.s32.totalorder %s36, 34
      %s43 = sphi 0, %s55
      %s44 = sphi 0, %s51
      %s45 = sphi 0, %s43
      %s46 = sphi 0, %s44
      %s47 = sphi 0, %s45
      %s48 = sphi 0, %s46
      %s62 = sphi 0, %s64
      %s65 = sphi 0, %s62
      %s66 = sphi 0, %s65
      %s82 = sphi 0, %s66
      %s92 = sphi 0, %s94
      %s95 = sphi 0, %s92
      %s96 = sphi 0, %s95
      %s112 = sphi 0, %s96
      %s116 = sphi 0, %s116
      %s118 = sphi 0, %s116
      %s119 = sphi 0, %s118
      %s133 = sphi 0, %s119
      %s137 = sphi 0, %s137
      %s139 = sphi 0, %s137
      %s140 = sphi 0, %s139
      %s154 = sphi 0, %s140
      %s158 = sphi 0, %s158
      %s160 = sphi 0, %s158
      %s161 = sphi 0, %s160
      %s175 = sphi 0, %s161
      %s179 = sphi 0, %s179
      %s181 = sphi 0, %s179
      %s182 = sphi 0, %s181
      %s196 = sphi 0, %s182
      %s200 = sphi 0, %s200
      %s202 = sphi 0, %s200
      %s203 = sphi 0, %s202
      %s217 = sphi 0, %s203
      %s225 = sphi 0, %s227
      %s228 = sphi 0, %s225
      %s229 = sphi 0, %s228
      %s245 = sphi 0, %s229
    $region4: #{tpu_custom_call.1} parent=1 // loop_header_branch
      %39 = sbr.rel (%p37) target = $region8
    $region5: #{tpu_custom_call.1} parent=1 // loop_body
      %s41 = ssub.s32 %s36, 1
      %s42 = ssub.s32 %s36, 2
      %s49 = sadd.s32 1, %s44
      %p50 = scmp.ge.s32.totalorder %s49, 16
      %s51 = scalar_select %p50, 0, %s49
      %s52 = sadd.s32 1, %s43
      %s53 = scalar_select %p50, %s52, %s43
      %p54 = scmp.ge.s32.totalorder %s53, 2
      %s55 = scalar_select %p54, 0, %s53
      %s56 = sld [smem:[#allocation3 + %s44]]
      %s57 = sld [smem:[#allocation3 + %s51]]
      %s58 = ssub.s32 %s43, %s55
      %s59 = ssub.s32 %s56, %s57
      %s60 = sor.u32 %s58, %s59
      %p61 = scmp.eq.s32.totalorder %s60, 0
      %s63 = sadd.s32 %s62, 1
      %s64 = scalar_select %p61, %s62, %s63
      %p67 = pneg %p61
      %p68 = scmp.eq.s32.totalorder %s36, 31
      %p69 = por %p67, %p68
      %p70 = scmp.ne.s32.totalorder %s62, %s65
      %p71 = scmp.eq.s32.totalorder %s36, 0
      %p72 = por %p70, %p71
      %p73 = scmp.ne.s32.totalorder %s62, %s65
      %p74 = scmp.eq.s32.totalorder %s41, 31
      %p75 = por %p73, %p74
      %p76 = scmp.ne.s32.totalorder %s65, %s66
      %p77 = scmp.eq.s32.totalorder %s41, 0
      %p78 = por %p76, %p77
      %p79 = scmp.ne.s32.totalorder %s65, %s66
      %p80 = scmp.eq.s32.totalorder %s42, 31
      %p81 = por %p79, %p80
      %p83 = scmp.ne.s32.totalorder %s66, %s82
      %p84 = scmp.eq.s32.totalorder %s42, 0
      %p85 = por %p83, %p84
      %s86 = sld [smem:[#allocation4 + %s44]]
      %s87 = sld [smem:[#allocation4 + %s51]]
      %s88 = ssub.s32 %s43, %s55
      %s89 = ssub.s32 %s86, %s87
      %s90 = sor.u32 %s88, %s89
      %p91 = scmp.eq.s32.totalorder %s90, 0
      %s93 = sadd.s32 %s92, 1
      %s94 = scalar_select %p91, %s92, %s93
      %p97 = pneg %p91
      %p98 = scmp.eq.s32.totalorder %s36, 31
      %p99 = por %p97, %p98
      %p100 = scmp.ne.s32.totalorder %s92, %s95
      %p101 = scmp.eq.s32.totalorder %s36, 0
      %p102 = por %p100, %p101
      %p103 = scmp.ne.s32.totalorder %s92, %s95
      %p104 = scmp.eq.s32.totalorder %s41, 31
      %p105 = por %p103, %p104
      %p106 = scmp.ne.s32.totalorder %s95, %s96
      %p107 = scmp.eq.s32.totalorder %s41, 0
      %p108 = por %p106, %p107
      %p109 = scmp.ne.s32.totalorder %s95, %s96
      %p110 = scmp.eq.s32.totalorder %s42, 31
      %p111 = por %p109, %p110
      %p113 = scmp.ne.s32.totalorder %s96, %s112
      %p114 = scmp.eq.s32.totalorder %s42, 0
      %p115 = por %p113, %p114
      %s117 = sadd.s32 %s116, 1
      %p120 = scmp.eq.s32.totalorder %s36, 31
      %p121 = scmp.ne.s32.totalorder %s116, %s118
      %p122 = scmp.eq.s32.totalorder %s36, 0
      %p123 = por %p121, %p122
      %p124 = scmp.ne.s32.totalorder %s116, %s118
      %p125 = scmp.eq.s32.totalorder %s41, 31
      %p126 = por %p124, %p125
      %p127 = scmp.ne.s32.totalorder %s118, %s119
      %p128 = scmp.eq.s32.totalorder %s41, 0
      %p129 = por %p127, %p128
      %p130 = scmp.ne.s32.totalorder %s118, %s119
      %p131 = scmp.eq.s32.totalorder %s42, 31
      %p132 = por %p130, %p131
      %p134 = scmp.ne.s32.totalorder %s119, %s133
      %p135 = scmp.eq.s32.totalorder %s42, 0
      %p136 = por %p134, %p135
      %s138 = sadd.s32 %s137, 1
      %p141 = scmp.eq.s32.totalorder %s36, 31
      %p142 = scmp.ne.s32.totalorder %s137, %s139
      %p143 = scmp.eq.s32.totalorder %s36, 0
      %p144 = por %p142, %p143
      %p145 = scmp.ne.s32.totalorder %s137, %s139
      %p146 = scmp.eq.s32.totalorder %s41, 31
      %p147 = por %p145, %p146
      %p148 = scmp.ne.s32.totalorder %s139, %s140
      %p149 = scmp.eq.s32.totalorder %s41, 0
      %p150 = por %p148, %p149
      %p151 = scmp.ne.s32.totalorder %s139, %s140
      %p152 = scmp.eq.s32.totalorder %s42, 31
      %p153 = por %p151, %p152
      %p155 = scmp.ne.s32.totalorder %s140, %s154
      %p156 = scmp.eq.s32.totalorder %s42, 0
      %p157 = por %p155, %p156
      %s159 = sadd.s32 %s158, 1
      %p162 = scmp.eq.s32.totalorder %s36, 31
      %p163 = scmp.ne.s32.totalorder %s158, %s160
      %p164 = scmp.eq.s32.totalorder %s36, 0
      %p165 = por %p163, %p164
      %p166 = scmp.ne.s32.totalorder %s158, %s160
      %p167 = scmp.eq.s32.totalorder %s41, 31
      %p168 = por %p166, %p167
      %p169 = scmp.ne.s32.totalorder %s160, %s161
      %p170 = scmp.eq.s32.totalorder %s41, 0
      %p171 = por %p169, %p170
      %p172 = scmp.ne.s32.totalorder %s160, %s161
      %p173 = scmp.eq.s32.totalorder %s42, 31
      %p174 = por %p172, %p173
      %p176 = scmp.ne.s32.totalorder %s161, %s175
      %p177 = scmp.eq.s32.totalorder %s42, 0
      %p178 = por %p176, %p177
      %s180 = sadd.s32 %s179, 1
      %p183 = scmp.eq.s32.totalorder %s36, 31
      %p184 = scmp.ne.s32.totalorder %s179, %s181
      %p185 = scmp.eq.s32.totalorder %s36, 0
      %p186 = por %p184, %p185
      %p187 = scmp.ne.s32.totalorder %s179, %s181
      %p188 = scmp.eq.s32.totalorder %s41, 31
      %p189 = por %p187, %p188
      %p190 = scmp.ne.s32.totalorder %s181, %s182
      %p191 = scmp.eq.s32.totalorder %s41, 0
      %p192 = por %p190, %p191
      %p193 = scmp.ne.s32.totalorder %s181, %s182
      %p194 = scmp.eq.s32.totalorder %s42, 31
      %p195 = por %p193, %p194
      %p197 = scmp.ne.s32.totalorder %s182, %s196
      %p198 = scmp.eq.s32.totalorder %s42, 0
      %p199 = por %p197, %p198
      %s201 = sadd.s32 %s200, 1
      %p204 = scmp.eq.s32.totalorder %s36, 31
      %p205 = scmp.ne.s32.totalorder %s200, %s202
      %p206 = scmp.eq.s32.totalorder %s36, 0
      %p207 = por %p205, %p206
      %p208 = scmp.ne.s32.totalorder %s200, %s202
      %p209 = scmp.eq.s32.totalorder %s41, 31
      %p210 = por %p208, %p209
      %p211 = scmp.ne.s32.totalorder %s202, %s203
      %p212 = scmp.eq.s32.totalorder %s41, 0
      %p213 = por %p211, %p212
      %p214 = scmp.ne.s32.totalorder %s202, %s203
      %p215 = scmp.eq.s32.totalorder %s42, 31
      %p216 = por %p214, %p215
      %p218 = scmp.ne.s32.totalorder %s203, %s217
      %p219 = scmp.eq.s32.totalorder %s42, 0
      %p220 = por %p218, %p219
      %s221 = ssub.s32 %s43, %s55
      %s222 = ssub.s32 %s44, %s51
      %s223 = sor.u32 %s221, %s222
      %p224 = scmp.eq.s32.totalorder %s223, 0
      %s226 = sadd.s32 %s225, 1
      %s227 = scalar_select %p224, %s225, %s226
      %p230 = pneg %p224
      %p231 = scmp.eq.s32.totalorder %s36, 31
      %p232 = por %p230, %p231
      %p233 = scmp.ne.s32.totalorder %s225, %s228
      %p234 = scmp.eq.s32.totalorder %s36, 0
      %p235 = por %p233, %p234
      %p236 = scmp.ne.s32.totalorder %s225, %s228
      %p237 = scmp.eq.s32.totalorder %s41, 31
      %p238 = por %p236, %p237
      %p239 = scmp.ne.s32.totalorder %s228, %s229
      %p240 = scmp.eq.s32.totalorder %s41, 0
      %p241 = por %p239, %p240
      %p242 = scmp.ne.s32.totalorder %s228, %s229
      %p243 = scmp.eq.s32.totalorder %s42, 31
      %p244 = por %p242, %p243
      %p246 = scmp.ne.s32.totalorder %s229, %s245
      %p247 = scmp.eq.s32.totalorder %s42, 0
      %p248 = por %p246, %p247
      %p249 = scmp.le.s32.totalorder 1, %s36
      %p250 = scmp.lt.s32.totalorder %s36, 33
      %p251 = pnand %p249, %p250
      %p252 = pneg %p251
      // Predicated region
      $region9: #{tpu_custom_call.1} parent=5 // pred_check
        _
      $region10: #{tpu_custom_call.1} parent=5 // pred_check_branch
        %254 = sbr.rel (%p251) target = $region12
      $region11: #{tpu_custom_call.1} parent=5 // pred_region
        %s255 = ssub.s32 %s36, 1
        // Predicated region
        $region13: #{tpu_custom_call.1} parent=11 // pred_check
          %p256 = pneg %p129
        $region14: #{tpu_custom_call.1} parent=11 // pred_check_branch
          %258 = sbr.rel (%p256) target = $region16
        $region15: #{tpu_custom_call.1} parent=11 // pred_region
          %s260 = ssub.s32 16, 16
          %261 = vsyncadd [#allocation8], %s260
          %s263 = sshll.u32 %s4, 4
          %s264 = int_to_ptr.vmem [resolvable:$true] %s263
          %266 = dma.vmem_to_smem %s264, 16, [#allocation11], [#allocation8]
        $region16: #{tpu_custom_call.1} parent=11 // pred_fallthru
          _
        // Predicated region
        $region17: #{tpu_custom_call.1} parent=11 // pred_check
          %p267 = pneg %p150
        $region18: #{tpu_custom_call.1} parent=11 // pred_check_branch
          %269 = sbr.rel (%p267) target = $region20
        $region19: #{tpu_custom_call.1} parent=11 // pred_region
          %s271 = ssub.s32 32, 32
          %272 = vsyncadd [#allocation13], %s271
          %s274 = sshll.u32 %s5, 4
          %s275 = int_to_ptr.vmem [resolvable:$true] %s274
          %277 = dma.vmem_to_smem %s275, 32, [#allocation12], [#allocation13]
        $region20: #{tpu_custom_call.1} parent=11 // pred_fallthru
          _
        // Predicated region
        $region21: #{tpu_custom_call.1} parent=11 // pred_check
          %p278 = pneg %p171
        $region22: #{tpu_custom_call.1} parent=11 // pred_check_branch
          %280 = sbr.rel (%p278) target = $region24
        $region23: #{tpu_custom_call.1} parent=11 // pred_region
          %s282 = ssub.s32 16, 16
          %283 = vsyncadd [#allocation13], %s282
          %s285 = sshll.u32 %s6, 4
          %s286 = int_to_ptr.vmem [resolvable:$true] %s285
          %288 = dma.vmem_to_smem %s286, 16, [#allocation14], [#allocation13]
        $region24: #{tpu_custom_call.1} parent=11 // pred_fallthru
          _
        // Predicated region
        $region25: #{tpu_custom_call.1} parent=11 // pred_check
          %p289 = pneg %p192
        $region26: #{tpu_custom_call.1} parent=11 // pred_check_branch
          %291 = sbr.rel (%p289) target = $region28
        $region27: #{tpu_custom_call.1} parent=11 // pred_region
          _
        $region28: #{tpu_custom_call.1} parent=11 // pred_fallthru
          _
        // Predicated region
        $region29: #{tpu_custom_call.1} parent=11 // pred_check
          %p292 = pneg %p213
        $region30: #{tpu_custom_call.1} parent=11 // pred_check_branch
          %294 = sbr.rel (%p292) target = $region32
        $region31: #{tpu_custom_call.1} parent=11 // pred_region
          _
        $region32: #{tpu_custom_call.1} parent=11 // pred_fallthru
          _
      $region12: #{tpu_custom_call.1} parent=5 // pred_fallthru
        _
      %p295 = scmp.lt.s32.totalorder %s36, 32
      // Predicated region
      $region33: #{tpu_custom_call.1} parent=5 // pred_check
        %p296 = pneg %p295
      $region34: #{tpu_custom_call.1} parent=5 // pred_check_branch
        %298 = sbr.rel (%p296) target = $region36
      $region35: #{tpu_custom_call.1} parent=5 // pred_region
        // Predicated region
        $region37: #{tpu_custom_call.1} parent=35 // pred_check
          %p299 = pneg %p72
        $region38: #{tpu_custom_call.1} parent=35 // pred_check_branch
          %301 = sbr.rel (%p299) target = $region40
        $region39: #{tpu_custom_call.1} parent=35 // pred_region
          %s302 = sand.u32 %s62, 1
          %s303 = scalar_lea.sflag [#allocation6], %s302
          %s304 = sand.u32 %s62, 1
          %s305 = smul.addr %s304, 32
          %s306 = scalar_lea.vmem [#allocation5], %s305
          %s307 = sld [smem:[#allocation3 + %s44]]
          %s309 = ssub.s32 512, 512
          %310 = vsyncadd %s303, %s309
          %s311 = smul.addr %s43, 32
          %s312 = sadd.s32 %s307, %s311
          %s313 = smul.addr %s312, 128
          %s314 = scalar_lea.hbm %s2, %s313
          %s315 = sshll.u32 %s306, 4
          %s316 = int_to_ptr.vmem [resolvable:$true] %s315
          %321 = dma.hbm_to_vmem [thread:$0]  %s314, 512, %s316, %s303, 1024, 128, 8
        $region40: #{tpu_custom_call.1} parent=35 // pred_fallthru
          _
        // Predicated region
        $region41: #{tpu_custom_call.1} parent=35 // pred_check
          %p322 = pneg %p102
        $region42: #{tpu_custom_call.1} parent=35 // pred_check_branch
          %324 = sbr.rel (%p322) target = $region44
        $region43: #{tpu_custom_call.1} parent=35 // pred_region
          %s325 = sand.u32 %s92, 1
          %s326 = scalar_lea.sflag [#allocation10], %s325
          %s327 = sand.u32 %s92, 1
          %s328 = smul.addr %s327, 32
          %s329 = scalar_lea.vmem [#allocation9], %s328
          %s330 = sld [smem:[#allocation4 + %s44]]
          %s332 = ssub.s32 512, 512
          %333 = vsyncadd %s326, %s332
          %s334 = smul.addr %s43, 32
          %s335 = sadd.s32 %s330, %s334
          %s336 = smul.addr %s335, 128
          %s337 = scalar_lea.hbm %s3, %s336
          %s338 = sshll.u32 %s329, 4
          %s339 = int_to_ptr.vmem [resolvable:$true] %s338
          %344 = dma.hbm_to_vmem [thread:$0]  %s337, 512, %s339, %s326, 1024, 128, 8
        $region44: #{tpu_custom_call.1} parent=35 // pred_fallthru
          _
      $region36: #{tpu_custom_call.1} parent=5 // pred_fallthru
        _
      %p345 = scmp.le.s32.totalorder 1, %s36
      %p346 = scmp.lt.s32.totalorder %s36, 33
      %p347 = pnand %p345, %p346
      %p348 = pneg %p347
      // Predicated region
      $region45: #{tpu_custom_call.1} parent=5 // pred_check
        _
      $region46: #{tpu_custom_call.1} parent=5 // pred_check_branch
        %350 = sbr.rel (%p347) target = $region48
      $region47: #{tpu_custom_call.1} parent=5 // pred_region
        %s351 = ssub.s32 %s36, 1
        %s352 = sand.u32 %s65, 1
        %s353 = scalar_lea.sflag [#allocation6], %s352
        %s354 = sand.u32 %s65, 1
        %s355 = smul.addr %s354, 32
        %s356 = scalar_lea.vmem [#allocation5], %s355
        // Predicated region
        $region49: #{tpu_custom_call.1} parent=47 // pred_check
          %p357 = pneg %p78
        $region50: #{tpu_custom_call.1} parent=47 // pred_check_branch
          %359 = sbr.rel (%p357) target = $region52
        $region51: #{tpu_custom_call.1} parent=47 // pred_region
          %360 = dma.done %s353, 512
        $region52: #{tpu_custom_call.1} parent=47 // pred_fallthru
          _
        %s361 = sand.u32 %s95, 1
        %s362 = scalar_lea.sflag [#allocation10], %s361
        %s363 = sand.u32 %s95, 1
        %s364 = smul.addr %s363, 32
        %s365 = scalar_lea.vmem [#allocation9], %s364
        // Predicated region
        $region53: #{tpu_custom_call.1} parent=47 // pred_check
          %p366 = pneg %p108
        $region54: #{tpu_custom_call.1} parent=47 // pred_check_branch
          %368 = sbr.rel (%p366) target = $region56
        $region55: #{tpu_custom_call.1} parent=47 // pred_region
          %369 = dma.done %s362, 512
        $region56: #{tpu_custom_call.1} parent=47 // pred_fallthru
          _
        // Predicated region
        $region57: #{tpu_custom_call.1} parent=47 // pred_check
          %p370 = pneg %p129
        $region58: #{tpu_custom_call.1} parent=47 // pred_check_branch
          %372 = sbr.rel (%p370) target = $region60
        $region59: #{tpu_custom_call.1} parent=47 // pred_region
          %373 = dma.done [#allocation8], 16
        $region60: #{tpu_custom_call.1} parent=47 // pred_fallthru
          _
        // Predicated region
        $region61: #{tpu_custom_call.1} parent=47 // pred_check
          %p374 = pneg %p150
        $region62: #{tpu_custom_call.1} parent=47 // pred_check_branch
          %376 = sbr.rel (%p374) target = $region64
        $region63: #{tpu_custom_call.1} parent=47 // pred_region
          %377 = dma.done [#allocation13], 32
        $region64: #{tpu_custom_call.1} parent=47 // pred_fallthru
          _
        // Predicated region
        $region65: #{tpu_custom_call.1} parent=47 // pred_check
          %p378 = pneg %p171
        $region66: #{tpu_custom_call.1} parent=47 // pred_check_branch
          %380 = sbr.rel (%p378) target = $region68
        $region67: #{tpu_custom_call.1} parent=47 // pred_region
          %381 = dma.done [#allocation13], 16
        $region68: #{tpu_custom_call.1} parent=47 // pred_fallthru
          _
        %382 = sfence
        %s383 = sand.u32 %s65, 1
        %s384 = scalar_lea.sflag [#allocation6], %s383
        %s385 = sand.u32 %s65, 1
        %s386 = smul.addr %s385, 32
        %s387 = scalar_lea.vmem [#allocation5], %s386
        %p388 = pneg %p78
        %p389 = pneg %p75
        %s390 = sand.u32 %s95, 1
        %s391 = scalar_lea.sflag [#allocation10], %s390
        %s392 = sand.u32 %s95, 1
        %s393 = smul.addr %s392, 32
        %s394 = scalar_lea.vmem [#allocation9], %s393
        %p395 = pneg %p108
        %p396 = pneg %p105
        %p397 = pneg %p129
        %p398 = pneg %p126
        %p399 = pneg %p150
        %p400 = pneg %p147
        %p401 = pneg %p171
        %p402 = pneg %p168
        %p403 = pneg %p192
        %p404 = pneg %p189
        %p405 = pneg %p213
        %p406 = pneg %p210
        %p407 = pneg %p241
        %p408 = pneg %p238
        %s409 = sand.u32 %s228, 1
        %s410 = scalar_lea.sflag [#allocation7], %s409
        %s411 = sand.u32 %s228, 1
        %s412 = smul.addr %s411, 32
        %s413 = scalar_lea.vmem [#allocation15], %s412
        %s414 = sld [smem:[#allocation3 + %s46]]
        %s415 = sld [smem:[#allocation4 + %s46]]
        %s416 = sld [smem:[#allocation11 + %s46]]
        %v417 = vld [vmem:[%s356] sm:$0xff]
        %v418 = vld [vmem:[%s356 + $0x8] sm:$0xff]
        %v419 = vld [vmem:[%s356 + $0x10] sm:$0xff]
        %v420 = vld [vmem:[%s356 + $0x18] sm:$0xff]
        %v421 = vld [vmem:[%s365] sm:$0xff]
        %v422 = vld [vmem:[%s365 + $0x8] sm:$0xff]
        %v423 = vld [vmem:[%s365 + $0x10] sm:$0xff]
        %v424 = vld [vmem:[%s365 + $0x18] sm:$0xff]
        %s425 = ssub.f32 1.0, %s416
        %v426 = vstv %s425
        %v427 = vmul.f32 %v426, %v417
        %v428 = vmul.f32 %v426, %v418
        %v429 = vmul.f32 %v426, %v419
        %v430 = vmul.f32 %v426, %v420
        %v431 = vstv %s416
        %v432 = vmul.f32 %v431, %v421
        %v433 = vmul.f32 %v431, %v422
        %v434 = vmul.f32 %v431, %v423
        %v435 = vmul.f32 %v431, %v424
        %v436 = vadd.f32 %v427, %v432
        %v437 = vadd.f32 %v428, %v433
        %v438 = vadd.f32 %v429, %v434
        %v439 = vadd.f32 %v430, %v435
        %v440 = vld [vmem:[%s7] sm:$0xff]
        %v441 = vld [vmem:[%s7 + $0x8] sm:$0xff]
        %v442 = vld [vmem:[%s8] sm:$0xff]
        %s443 = sld [smem:[#allocation12]]
        %v444 = vstv %s443
        %v445 = vmul.f32 %v444, %v436
        %s446 = sld [smem:[#allocation12 + $0x1]]
        %v447 = vstv %s446
        %v448 = vmul.f32 %v447, %v437
        %v449 = vadd.f32 %v445, %v448
        %s450 = sld [smem:[#allocation12 + $0x2]]
        %v451 = vstv %s450
        %v452 = vmul.f32 %v451, %v438
        %v453 = vadd.f32 %v449, %v452
        %s454 = sld [smem:[#allocation12 + $0x3]]
        %v455 = vstv %s454
        %v456 = vmul.f32 %v455, %v439
        %v457 = vadd.f32 %v453, %v456
        %s458 = sld [smem:[#allocation14]]
        %v459 = vstv %s458
        %v460 = vadd.f32 %v457, %v459
        %vm461 = vcmask 64512
        %v463 = vsel %vm461, %v440, 0
        %v466 = vsel %vm461, %v441, 0
        %468 = vmatprep.subr.mxu0 0.0
        %469 = vmatpush1.msra.mxu0 0.0
        %470 = vmatprep.subr.mxu0 0.0
        %471 = vmatpush1.msra.mxu0 0.0
        %472 = vmatprep.subr.mxu0 0.0
        %473 = vmatpush1.msra.mxu0 0.0
        %474 = vmatprep.subr.mxu0 0.0
        %475 = vmatpush1.msra.mxu0 0.0
        %476 = vmatprep.subr.mxu0 0.0
        %477 = vmatpush1.msra.mxu0 0.0
        %478 = vmatprep.subr.mxu0 0.0
        %479 = vmatpush1.msra.mxu0 0.0
        %480 = vmatprep.subr.mxu0 0.0
        %481 = vmatpush1.msra.mxu0 0.0
        %482 = vmatprep.subr.mxu0 0.0
        %483 = vmatpush1.msra.mxu0 0.0
        %484 = vmatprep.subr.mxu0 0.0
        %485 = vmatpush1.msra.mxu0 0.0
        %486 = vmatprep.subr.mxu0 0.0
        %487 = vmatpush1.msra.mxu0 0.0
        %488 = vmatprep.subr.mxu0 0.0
        %489 = vmatpush1.msra.mxu0 0.0
        %490 = vmatprep.subr.mxu0 0.0
        %491 = vmatpush1.msra.mxu0 0.0
        %492 = vmatprep.subr.mxu0 0.0
        %493 = vmatpush1.msra.mxu0 0.0
        %494 = vmatprep.subr.mxu0 0.0
        %495 = vmatpush1.msra.mxu0 0.0
        %496 = vmatprep.subr.mxu0 0.0
        %497 = vmatpush1.msra.mxu0 0.0
        %498 = vmatprep.subr.mxu0 0.0
        %499 = vmatpush1.msra.mxu0 %v460
        %500 = vmatprep.subr.mxu0 0.0
        %501 = vmatpush2.msra.mxu0 0.0
        %502 = vmatprep.subr.mxu0 0.0
        %503 = vmatpush2.msra.mxu0 0.0
        %504 = vmatprep.subr.mxu0 0.0
        %505 = vmatpush2.msra.mxu0 0.0
        %506 = vmatprep.subr.mxu0 0.0
        %507 = vmatpush2.msra.mxu0 0.0
        %508 = vmatprep.subr.mxu0 0.0
        %509 = vmatpush2.msra.mxu0 0.0
        %510 = vmatprep.subr.mxu0 0.0
        %511 = vmatpush2.msra.mxu0 0.0
        %512 = vmatprep.subr.mxu0 0.0
        %513 = vmatpush2.msra.mxu0 0.0
        %514 = vmatprep.subr.mxu0 0.0
        %515 = vmatpush2.msra.mxu0 0.0
        %516 = vmatprep.subr.mxu0 0.0
        %517 = vmatpush2.msra.mxu0 0.0
        %518 = vmatprep.subr.mxu0 0.0
        %519 = vmatpush2.msra.mxu0 0.0
        %520 = vmatprep.subr.mxu0 0.0
        %521 = vmatpush2.msra.mxu0 0.0
        %522 = vmatprep.subr.mxu0 0.0
        %523 = vmatpush2.msra.mxu0 0.0
        %524 = vmatprep.subr.mxu0 0.0
        %525 = vmatpush2.msra.mxu0 0.0
        %526 = vmatprep.subr.mxu0 0.0
        %527 = vmatpush2.msra.mxu0 0.0
        %528 = vmatprep.subr.mxu0 0.0
        %529 = vmatpush2.msra.mxu0 0.0
        %530 = vmatprep.subr.mxu0 0.0
        %531 = vmatpush2.msra.mxu0 0.0
        %532 = vmatprep.mubr.f32.mxu0 0.0
        %533 = vmatmul.mubr.f32.gmra.mxu0 %v463
        %v534 = vpop.f32.mrf.mxu0
        %v535 = vadd.f32 0.0, %v534
        %v536 = vpop.f32.mrf.mxu0
        %537 = vmatprep.mubr.f32.mxu0 0.0
        %538 = vmatmul.mubr.f32.gmra.mxu0 %v466
        %v539 = vpop.f32.mrf.mxu0
        %v540 = vadd.f32 0.0, %v539
        %v541 = vpop.f32.mrf.mxu0
        %542 = vdwg.mxu0
        %v544 = vsel %vm461, %v535, 0
        %v547 = vsel %vm461, %v540, 0
        %549 = vmatprep.subr.mxu0 0.0
        %550 = vmatpush1.msra.mxu0 0.0
        %551 = vmatprep.subr.mxu0 0.0
        %552 = vmatpush1.msra.mxu0 0.0
        %553 = vmatprep.subr.mxu0 0.0
        %554 = vmatpush1.msra.mxu0 0.0
        %555 = vmatprep.subr.mxu0 0.0
        %556 = vmatpush1.msra.mxu0 0.0
        %557 = vmatprep.subr.mxu0 0.0
        %558 = vmatpush1.msra.mxu0 0.0
        %559 = vmatprep.subr.mxu0 0.0
        %560 = vmatpush1.msra.mxu0 0.0
        %561 = vmatprep.subr.mxu0 0.0
        %562 = vmatpush1.msra.mxu0 0.0
        %563 = vmatprep.subr.mxu0 0.0
        %564 = vmatpush1.msra.mxu0 0.0
        %565 = vmatprep.subr.mxu0 0.0
        %566 = vmatpush1.msra.mxu0 0.0
        %567 = vmatprep.subr.mxu0 0.0
        %568 = vmatpush1.msra.mxu0 0.0
        %569 = vmatprep.subr.mxu0 0.0
        %570 = vmatpush1.msra.mxu0 0.0
        %571 = vmatprep.subr.mxu0 0.0
        %572 = vmatpush1.msra.mxu0 0.0
        %573 = vmatprep.subr.mxu0 0.0
        %574 = vmatpush1.msra.mxu0 0.0
        %575 = vmatprep.subr.mxu0 0.0
        %576 = vmatpush1.msra.mxu0 0.0
        %577 = vmatprep.subr.mxu0 0.0
        %578 = vmatpush1.msra.mxu0 0.0
        %579 = vmatprep.subr.mxu0 0.0
        %580 = vmatpush1.msra.mxu0 %v442
        %581 = vmatprep.subr.mxu0 0.0
        %582 = vmatpush2.msra.mxu0 0.0
        %583 = vmatprep.subr.mxu0 0.0
        %584 = vmatpush2.msra.mxu0 0.0
        %585 = vmatprep.subr.mxu0 0.0
        %586 = vmatpush2.msra.mxu0 0.0
        %587 = vmatprep.subr.mxu0 0.0
        %588 = vmatpush2.msra.mxu0 0.0
        %589 = vmatprep.subr.mxu0 0.0
        %590 = vmatpush2.msra.mxu0 0.0
        %591 = vmatprep.subr.mxu0 0.0
        %592 = vmatpush2.msra.mxu0 0.0
        %593 = vmatprep.subr.mxu0 0.0
        %594 = vmatpush2.msra.mxu0 0.0
        %595 = vmatprep.subr.mxu0 0.0
        %596 = vmatpush2.msra.mxu0 0.0
        %597 = vmatprep.subr.mxu0 0.0
        %598 = vmatpush2.msra.mxu0 0.0
        %599 = vmatprep.subr.mxu0 0.0
        %600 = vmatpush2.msra.mxu0 0.0
        %601 = vmatprep.subr.mxu0 0.0
        %602 = vmatpush2.msra.mxu0 0.0
        %603 = vmatprep.subr.mxu0 0.0
        %604 = vmatpush2.msra.mxu0 0.0
        %605 = vmatprep.subr.mxu0 0.0
        %606 = vmatpush2.msra.mxu0 0.0
        %607 = vmatprep.subr.mxu0 0.0
        %608 = vmatpush2.msra.mxu0 0.0
        %609 = vmatprep.subr.mxu0 0.0
        %610 = vmatpush2.msra.mxu0 0.0
        %611 = vmatprep.subr.mxu0 0.0
        %612 = vmatpush2.msra.mxu0 0.0
        %613 = vmatprep.mubr.f32.mxu0 0.0
        %614 = vmatmul.mubr.f32.gmra.mxu0 %v544
        %v615 = vpop.f32.mrf.mxu0
        %v616 = vadd.f32 0.0, %v615
        %v617 = vpop.f32.mrf.mxu0
        %618 = vmatprep.mubr.f32.mxu0 0.0
        %619 = vmatmul.mubr.f32.gmra.mxu0 %v547
        %v620 = vpop.f32.mrf.mxu0
        %v621 = vadd.f32 0.0, %v620
        %v622 = vpop.f32.mrf.mxu0
        %623 = vdwg.mxu0
        %vm624 = vcmask 130048
        %625 = vst.msk [vmem:[%s413] sm:$0xff] %vm624, %v616
        %626 = vst.msk [vmem:[%s413 + $0x8] sm:$0xff] %vm624, %v621
        %s627 = sld [smem:[#allocation12 + $0x80]]
        %v628 = vstv %s627
        %v629 = vmul.f32 %v628, %v436
        %s630 = sld [smem:[#allocation12 + $0x81]]
        %v631 = vstv %s630
        %v632 = vmul.f32 %v631, %v437
        %v633 = vadd.f32 %v629, %v632
        %s634 = sld [smem:[#allocation12 + $0x82]]
        %v635 = vstv %s634
        %v636 = vmul.f32 %v635, %v438
        %v637 = vadd.f32 %v633, %v636
        %s638 = sld [smem:[#allocation12 + $0x83]]
        %v639 = vstv %s638
        %v640 = vmul.f32 %v639, %v439
        %v641 = vadd.f32 %v637, %v640
        %s642 = sld [smem:[#allocation14 + $0x1]]
        %v643 = vstv %s642
        %v644 = vadd.f32 %v641, %v643
        %645 = vmatprep.subr.mxu0 0.0
        %646 = vmatpush1.msra.mxu0 0.0
        %647 = vmatprep.subr.mxu0 0.0
        %648 = vmatpush1.msra.mxu0 0.0
        %649 = vmatprep.subr.mxu0 0.0
        %650 = vmatpush1.msra.mxu0 0.0
        %651 = vmatprep.subr.mxu0 0.0
        %652 = vmatpush1.msra.mxu0 0.0
        %653 = vmatprep.subr.mxu0 0.0
        %654 = vmatpush1.msra.mxu0 0.0
        %655 = vmatprep.subr.mxu0 0.0
        %656 = vmatpush1.msra.mxu0 0.0
        %657 = vmatprep.subr.mxu0 0.0
        %658 = vmatpush1.msra.mxu0 0.0
        %659 = vmatprep.subr.mxu0 0.0
        %660 = vmatpush1.msra.mxu0 0.0
        %661 = vmatprep.subr.mxu0 0.0
        %662 = vmatpush1.msra.mxu0 0.0
        %663 = vmatprep.subr.mxu0 0.0
        %664 = vmatpush1.msra.mxu0 0.0
        %665 = vmatprep.subr.mxu0 0.0
        %666 = vmatpush1.msra.mxu0 0.0
        %667 = vmatprep.subr.mxu0 0.0
        %668 = vmatpush1.msra.mxu0 0.0
        %669 = vmatprep.subr.mxu0 0.0
        %670 = vmatpush1.msra.mxu0 0.0
        %671 = vmatprep.subr.mxu0 0.0
        %672 = vmatpush1.msra.mxu0 0.0
        %673 = vmatprep.subr.mxu0 0.0
        %674 = vmatpush1.msra.mxu0 0.0
        %675 = vmatprep.subr.mxu0 0.0
        %676 = vmatpush1.msra.mxu0 %v644
        %677 = vmatprep.subr.mxu0 0.0
        %678 = vmatpush2.msra.mxu0 0.0
        %679 = vmatprep.subr.mxu0 0.0
        %680 = vmatpush2.msra.mxu0 0.0
        %681 = vmatprep.subr.mxu0 0.0
        %682 = vmatpush2.msra.mxu0 0.0
        %683 = vmatprep.subr.mxu0 0.0
        %684 = vmatpush2.msra.mxu0 0.0
        %685 = vmatprep.subr.mxu0 0.0
        %686 = vmatpush2.msra.mxu0 0.0
        %687 = vmatprep.subr.mxu0 0.0
        %688 = vmatpush2.msra.mxu0 0.0
        %689 = vmatprep.subr.mxu0 0.0
        %690 = vmatpush2.msra.mxu0 0.0
        %691 = vmatprep.subr.mxu0 0.0
        %692 = vmatpush2.msra.mxu0 0.0
        %693 = vmatprep.subr.mxu0 0.0
        %694 = vmatpush2.msra.mxu0 0.0
        %695 = vmatprep.subr.mxu0 0.0
        %696 = vmatpush2.msra.mxu0 0.0
        %697 = vmatprep.subr.mxu0 0.0
        %698 = vmatpush2.msra.mxu0 0.0
        %699 = vmatprep.subr.mxu0 0.0
        %700 = vmatpush2.msra.mxu0 0.0
        %701 = vmatprep.subr.mxu0 0.0
        %702 = vmatpush2.msra.mxu0 0.0
        %703 = vmatprep.subr.mxu0 0.0
        %704 = vmatpush2.msra.mxu0 0.0
        %705 = vmatprep.subr.mxu0 0.0
        %706 = vmatpush2.msra.mxu0 0.0
        %707 = vmatprep.subr.mxu0 0.0
        %708 = vmatpush2.msra.mxu0 0.0
        %709 = vmatprep.mubr.f32.mxu0 0.0
        %710 = vmatmul.mubr.f32.gmra.mxu0 %v463
        %v711 = vpop.f32.mrf.mxu0
        %v712 = vadd.f32 0.0, %v711
        %v713 = vpop.f32.mrf.mxu0
        %714 = vmatprep.mubr.f32.mxu0 0.0
        %715 = vmatmul.mubr.f32.gmra.mxu0 %v466
        %v716 = vpop.f32.mrf.mxu0
        %v717 = vadd.f32 0.0, %v716
        %v718 = vpop.f32.mrf.mxu0
        %719 = vdwg.mxu0
        %v721 = vsel %vm461, %v712, 0
        %v724 = vsel %vm461, %v717, 0
        %726 = vmatprep.subr.mxu0 0.0
        %727 = vmatpush1.msra.mxu0 0.0
        %728 = vmatprep.subr.mxu0 0.0
        %729 = vmatpush1.msra.mxu0 0.0
        %730 = vmatprep.subr.mxu0 0.0
        %731 = vmatpush1.msra.mxu0 0.0
        %732 = vmatprep.subr.mxu0 0.0
        %733 = vmatpush1.msra.mxu0 0.0
        %734 = vmatprep.subr.mxu0 0.0
        %735 = vmatpush1.msra.mxu0 0.0
        %736 = vmatprep.subr.mxu0 0.0
        %737 = vmatpush1.msra.mxu0 0.0
        %738 = vmatprep.subr.mxu0 0.0
        %739 = vmatpush1.msra.mxu0 0.0
        %740 = vmatprep.subr.mxu0 0.0
        %741 = vmatpush1.msra.mxu0 0.0
        %742 = vmatprep.subr.mxu0 0.0
        %743 = vmatpush1.msra.mxu0 0.0
        %744 = vmatprep.subr.mxu0 0.0
        %745 = vmatpush1.msra.mxu0 0.0
        %746 = vmatprep.subr.mxu0 0.0
        %747 = vmatpush1.msra.mxu0 0.0
        %748 = vmatprep.subr.mxu0 0.0
        %749 = vmatpush1.msra.mxu0 0.0
        %750 = vmatprep.subr.mxu0 0.0
        %751 = vmatpush1.msra.mxu0 0.0
        %752 = vmatprep.subr.mxu0 0.0
        %753 = vmatpush1.msra.mxu0 0.0
        %754 = vmatprep.subr.mxu0 0.0
        %755 = vmatpush1.msra.mxu0 0.0
        %756 = vmatprep.subr.mxu0 0.0
        %757 = vmatpush1.msra.mxu0 %v442
        %758 = vmatprep.subr.mxu0 0.0
        %759 = vmatpush2.msra.mxu0 0.0
        %760 = vmatprep.subr.mxu0 0.0
        %761 = vmatpush2.msra.mxu0 0.0
        %762 = vmatprep.subr.mxu0 0.0
        %763 = vmatpush2.msra.mxu0 0.0
        %764 = vmatprep.subr.mxu0 0.0
        %765 = vmatpush2.msra.mxu0 0.0
        %766 = vmatprep.subr.mxu0 0.0
        %767 = vmatpush2.msra.mxu0 0.0
        %768 = vmatprep.subr.mxu0 0.0
        %769 = vmatpush2.msra.mxu0 0.0
        %770 = vmatprep.subr.mxu0 0.0
        %771 = vmatpush2.msra.mxu0 0.0
        %772 = vmatprep.subr.mxu0 0.0
        %773 = vmatpush2.msra.mxu0 0.0
        %774 = vmatprep.subr.mxu0 0.0
        %775 = vmatpush2.msra.mxu0 0.0
        %776 = vmatprep.subr.mxu0 0.0
        %777 = vmatpush2.msra.mxu0 0.0
        %778 = vmatprep.subr.mxu0 0.0
        %779 = vmatpush2.msra.mxu0 0.0
        %780 = vmatprep.subr.mxu0 0.0
        %781 = vmatpush2.msra.mxu0 0.0
        %782 = vmatprep.subr.mxu0 0.0
        %783 = vmatpush2.msra.mxu0 0.0
        %784 = vmatprep.subr.mxu0 0.0
        %785 = vmatpush2.msra.mxu0 0.0
        %786 = vmatprep.subr.mxu0 0.0
        %787 = vmatpush2.msra.mxu0 0.0
        %788 = vmatprep.subr.mxu0 0.0
        %789 = vmatpush2.msra.mxu0 0.0
        %790 = vmatprep.mubr.f32.mxu0 0.0
        %791 = vmatmul.mubr.f32.gmra.mxu0 %v721
        %v792 = vpop.f32.mrf.mxu0
        %v793 = vadd.f32 0.0, %v792
        %v794 = vpop.f32.mrf.mxu0
        %795 = vmatprep.mubr.f32.mxu0 0.0
        %796 = vmatmul.mubr.f32.gmra.mxu0 %v724
        %v797 = vpop.f32.mrf.mxu0
        %v798 = vadd.f32 0.0, %v797
        %v799 = vpop.f32.mrf.mxu0
        %800 = vdwg.mxu0
        %s801 = scalar_lea.vmem %s413, 16 [#allocation15]
        %802 = vst.msk [vmem:[%s801] sm:$0xff] %vm624, %v793
        %803 = vst.msk [vmem:[%s801 + $0x8] sm:$0xff] %vm624, %v798
        %s804 = sand.u32 %s228, 1
        %s805 = scalar_lea.sflag [#allocation7], %s804
        %s806 = sand.u32 %s228, 1
        %s807 = smul.addr %s806, 32
        %s808 = scalar_lea.vmem [#allocation15], %s807
        // Predicated region
        $region69: #{tpu_custom_call.1} parent=47 // pred_check
          %p809 = pneg %p238
        $region70: #{tpu_custom_call.1} parent=47 // pred_check_branch
          %811 = sbr.rel (%p809) target = $region72
        $region71: #{tpu_custom_call.1} parent=47 // pred_region
          #allocation17 [shape = 'u32[6]{0}', space=smem, size = 0x18, scoped, tag = 'DMA stride descriptor']
          %s813 = ssub.s32 512, 512
          %814 = vsyncadd %s805, %s813
          %s815 = smul.addr %s46, 2
          %s816 = smul.addr %s45, 64
          %s817 = sadd.s32 %s815, %s816
          %s818 = smul.addr %s817, 128
          %s819 = scalar_lea.hbm %s9, %s818
          %s821 = sshll.u32 1, 14
          %s822 = sxor.u32 4294967295, %s821
          %s825 = sshll.u32 7, 18
          %s826 = sxor.u32 4294967295, %s825
          %s827 = sand.u32 0, %s826
          %s829 = sor.u32 %s827, 0
          %s830 = sshll.u32 %s808, 4
          %s831 = int_to_ptr.vmem [resolvable:$true] %s830
          %837 = sst [smem:[#allocation17]] 256
          %s838 = scalar_lea.smem [#allocation17], 1
          %839 = sst [smem:[%s838]] 4096
          %s840 = scalar_lea.smem [#allocation17], 2
          %841 = sst [smem:[%s840]] 2
          %s842 = scalar_lea.smem [#allocation17], 3
          %843 = sst [smem:[%s842]] 128
          %s844 = scalar_lea.smem [#allocation17], 4
          %845 = sst [smem:[%s844]] 128
          %s846 = scalar_lea.smem [#allocation17], 5
          %847 = sst [smem:[%s846]] 8
          %849 = dma.general %s831, 512, %s819, %s805, 131072, [#allocation17], %s829, 0
        $region72: #{tpu_custom_call.1} parent=47 // pred_fallthru
          _
      $region48: #{tpu_custom_call.1} parent=5 // pred_fallthru
        _
      %p850 = scmp.le.s32.totalorder 2, %s36
      // Predicated region
      $region73: #{tpu_custom_call.1} parent=5 // pred_check
        %p851 = pneg %p850
      $region74: #{tpu_custom_call.1} parent=5 // pred_check_branch
        %853 = sbr.rel (%p851) target = $region76
      $region75: #{tpu_custom_call.1} parent=5 // pred_region
        %s854 = ssub.s32 %s36, 2
        // Predicated region
        $region77: #{tpu_custom_call.1} parent=75 // pred_check
          %p855 = pneg %p244
        $region78: #{tpu_custom_call.1} parent=75 // pred_check_branch
          %857 = sbr.rel (%p855) target = $region80
        $region79: #{tpu_custom_call.1} parent=75 // pred_region
          %s858 = sand.u32 %s229, 1
          %s859 = scalar_lea.sflag [#allocation7], %s858
          %s860 = sand.u32 %s229, 1
          %s861 = smul.addr %s860, 32
          %s862 = scalar_lea.vmem [#allocation15], %s861
          %863 = dma.done %s859, 512
        $region80: #{tpu_custom_call.1} parent=75 // pred_fallthru
          _
      $region76: #{tpu_custom_call.1} parent=5 // pred_fallthru
        _
    $region6: #{tpu_custom_call.1} parent=1 // loop_footer
      %s40 = sadd.s32 1, %s36
    $region7: #{tpu_custom_call.1} parent=1 // loop_footer_branch
      %35 = sbr.rel target = $region3
    $region8: #{tpu_custom_call.1} parent=1 // loop_exit
      _
    %864 = vsyncpa [#allocation6], 1
    %s865 = scalar_lea.sflag [#allocation6], 1
    %866 = vsyncpa %s865, 1
    %867 = vsyncpa [#allocation10], 1
    %s868 = scalar_lea.sflag [#allocation10], 1
    %869 = vsyncpa %s868, 1
    %870 = vsyncpa [#allocation7], 1
    %s871 = scalar_lea.sflag [#allocation7], 1
    %872 = vsyncpa %s871, 1
    %873 = vsyncpa [#allocation8], 1
    %s874 = scalar_lea.sflag [#allocation8], 1
    %875 = vsyncpa %s874, 1
    %876 = vsyncpa [#allocation13], 1

</llo_original>
